<compile_context>
chip_gen: v7x
topology: tpu7x:2x2x1
jax: 0.10.0
libtpu: 0.0.40
codegen_flags: <defaults>
</compile_context>

<pallas_src>
import functools

import jax
import jax.numpy as jnp
import numpy as np
from jax.experimental import pallas as pl
from jax.experimental.pallas import tpu as pltpu


def _round_up(x, m):
    return ((x + m - 1) // m) * m


def _embedder_kernel(xt_ref, o_ref, *, freq_bands, include_input,
                     use_double_angle, reseed_every, out_pad):
    """xt_ref: (input_dim, TR) lane-dense block of the transposed input.
    o_ref : (TR, out_dim) natural-layout output block."""
    xt = xt_ref[...].astype(jnp.float32)          # (d, TR), f32 internal math
    tr = xt.shape[1]
    n_freqs = len(freq_bands)

    parts = []
    if include_input:
        parts.append(xt)

    if use_double_angle:
        # Ladder is exactly 1, 2, 4, ...: one sin + one cos, higher octaves via
        # s' = 2sc, c' = c^2 - s^2.  Re-seed every `reseed_every` octaves with a
        # direct evaluation to bound the compounding rounding error.
        s = c = None
        for k in range(n_freqs):
            f = freq_bands[k]
            if k % reseed_every == 0:
                arg = xt if f == 1.0 else xt * jnp.float32(f)
                s, c = jnp.sin(arg), jnp.cos(arg)
            else:
                s, c = 2.0 * s * c, c * c - s * s
            parts.append(s)
            parts.append(c)
    else:
        for f in freq_bands:
            arg = xt * jnp.float32(f)
            parts.append(jnp.sin(arg))
            parts.append(jnp.cos(arg))

    n_assembled = sum(p.shape[0] for p in parts)
    if out_pad > n_assembled:
        parts.append(jnp.zeros((out_pad - n_assembled, tr), jnp.float32))

    # Lane-dense assembly at the final sublane offsets, padded to a multiple of
    # 8 rows, then ONE aligned XLU transpose and ONE full-block store.
    packed = jnp.concatenate(parts, axis=0)        # (out_pad, TR)
    nat = jnp.transpose(packed, (1, 0))            # (TR, out_pad)
    o_ref[...] = nat[:, : o_ref.shape[1]].astype(o_ref.dtype)


class Embedder:
    """JAX/Pallas port of lib/network.py::Embedder (periodic_fns = sin, cos)."""

    def __init__(self, input_dim, max_freq_log2, N_freqs, log_sampling=True,
                 include_input=True, n_periodic_fns=2):
        self.input_dim = input_dim
        self.include_input = include_input
        self.N_freqs = N_freqs
        self.out_dim = 0
        if include_input:
            self.out_dim += input_dim
        self.out_dim += input_dim * N_freqs * n_periodic_fns

        if log_sampling:
            fb = 2.0 ** np.linspace(0.0, max_freq_log2, N_freqs)
        else:
            fb = np.linspace(2.0 ** 0.0, 2.0 ** max_freq_log2, N_freqs)
        self.freq_bands = tuple(float(f) for f in fb)

        # Double-angle recurrence usable iff the ladder is exactly 1, 2, 4, ...
        fb = self.freq_bands
        ok = len(fb) >= 1 and abs(fb[0] - 1.0) < 1e-12
        for a, b in zip(fb[:-1], fb[1:]):
            ok = ok and abs(b - 2.0 * a) <= 1e-9 * max(abs(b), 1.0)
        self.use_double_angle = ok

    def __call__(self, x, *, tile_rows=8192, out_dtype=None):
        assert x.shape[-1] == self.input_dim
        lead_shape = x.shape[:-1]
        n_rows = int(np.prod(lead_shape)) if lead_shape else 1
        out_dtype = x.dtype if out_dtype is None else jnp.dtype(out_dtype)

        x2d = x.reshape(n_rows, self.input_dim)
        # Single small wrapper transpose (12 B/row); see header comment for why
        # this stays in XLA rather than in-kernel.
        xt = x2d.T                                   # (input_dim, n_rows)

        # Row tile: multiple of 128, no padding of N (ragged last block is
        # handled by Pallas).  Keep the grid >= 2 steps for v7x megacore.
        n128 = _round_up(n_rows, 128)
        tr = max(128, (int(tile_rows) // 128) * 128)
        tr = min(tr, n128)
        if n128 >= 256 and pl.cdiv(n_rows, tr) < 2:
            tr = _round_up(pl.cdiv(n_rows, 2), 128)
        grid = (pl.cdiv(n_rows, tr),)

        out_pad = _round_up(self.out_dim, 8)

        kernel = functools.partial(
            _embedder_kernel,
            freq_bands=self.freq_bands,
            include_input=self.include_input,
            use_double_angle=self.use_double_angle,
            reseed_every=4,
            out_pad=out_pad,
        )

        in_itemsize = jnp.dtype(x.dtype).itemsize
        out_itemsize = jnp.dtype(out_dtype).itemsize
        cost = pl.CostEstimate(
            flops=int(n_rows * self.input_dim * (6 * max(self.N_freqs, 1) + 1)),
            transcendentals=int(n_rows * self.input_dim * 2 * max(self.N_freqs, 1)),
            bytes_accessed=int(n_rows * self.input_dim * in_itemsize
                               + n_rows * self.out_dim * out_itemsize),
        )

        out = pl.pallas_call(
            kernel,
            out_shape=jax.ShapeDtypeStruct((n_rows, self.out_dim), out_dtype),
            grid=grid,
            in_specs=[pl.BlockSpec((self.input_dim, tr), lambda i: (0, i))],
            out_specs=pl.BlockSpec((tr, self.out_dim), lambda i: (i, 0)),
            compiler_params=pltpu.CompilerParams(
                dimension_semantics=("parallel",),
                vmem_limit_bytes=48 * 1024 * 1024),
            cost_estimate=cost,
        )(xt)

        return out.reshape(*lead_shape, self.out_dim)


def _reference(x, freq_bands, include_input):
    parts = []
    if include_input:
        parts.append(x)
    for f in freq_bands:
        parts.append(jnp.sin(x * f))
        parts.append(jnp.cos(x * f))
    return jnp.concatenate(parts, axis=-1)


if __name__ == "__main__":
    # Points of dim 3, 4 frequency bands (standard NeRF-style config).
    input_dim, max_freq_log2, N_freqs = 3, 3, 4
    emb = Embedder(input_dim, max_freq_log2, N_freqs,
                   log_sampling=True, include_input=True)

    key = jax.random.PRNGKey(0)
    x = jax.random.normal(key, (2, 64, input_dim), dtype=jnp.float32)

    out = emb(x)
    out = jax.block_until_ready(out)

    assert out.shape == (2, 64, emb.out_dim), out.shape

    ref = _reference(x, emb.freq_bands, emb.include_input)
    # Double-angle recurrence (re-seeded every 4 octaves) differs from direct
    # sin/cos by a few ULPs per octave; keep a slightly relaxed tolerance.
    np.testing.assert_allclose(np.asarray(out), np.asarray(ref),
                               rtol=5e-5, atol=5e-5)

    print("KERNEL_OK")
</pallas_src>

<mosaic_0001>
module attributes {stable_mosaic.version = 11 : i64} {
  func.func @_embedder_kernel(%arg0: i32, %arg1: memref<3x128xf32, #tpu.memory_space<vmem>>, %arg2: memref<128x27xf32, #tpu.memory_space<vmem>>) attributes {dimension_semantics = [#tpu.dimension_semantics<parallel>], iteration_bounds = array<i64: 1>, scalar_prefetch = 0 : i64, scratch_operands = 0 : i64, tpu.core_type = #tpu.core_type<tc>, window_params = [{transform_indices = @transform_0, window_bounds = array<i64: 3, 128>}, {transform_indices = @transform_1, window_bounds = array<i64: 128, 27>}]} {
    %c0 = arith.constant 0 : index
    %c0_0 = arith.constant 0 : index
    %0 = vector.load %arg1[%c0, %c0_0] : memref<3x128xf32, #tpu.memory_space<vmem>>, vector<3x128xf32>
    %1 = math.sin %0 : vector<3x128xf32>
    %2 = math.cos %0 : vector<3x128xf32>
    %cst = arith.constant 2.000000e+00 : f32
    %3 = vector.broadcast %cst : f32 to vector<3x128xf32>
    %4 = arith.mulf %3, %1 : vector<3x128xf32>
    %5 = arith.mulf %4, %2 : vector<3x128xf32>
    %6 = arith.mulf %2, %2 : vector<3x128xf32>
    %7 = arith.mulf %1, %1 : vector<3x128xf32>
    %8 = arith.subf %6, %7 : vector<3x128xf32>
    %cst_1 = arith.constant 2.000000e+00 : f32
    %9 = vector.broadcast %cst_1 : f32 to vector<3x128xf32>
    %10 = arith.mulf %9, %5 : vector<3x128xf32>
    %11 = arith.mulf %10, %8 : vector<3x128xf32>
    %12 = arith.mulf %8, %8 : vector<3x128xf32>
    %13 = arith.mulf %5, %5 : vector<3x128xf32>
    %14 = arith.subf %12, %13 : vector<3x128xf32>
    %cst_2 = arith.constant 2.000000e+00 : f32
    %15 = vector.broadcast %cst_2 : f32 to vector<3x128xf32>
    %16 = arith.mulf %15, %11 : vector<3x128xf32>
    %17 = arith.mulf %16, %14 : vector<3x128xf32>
    %18 = arith.mulf %14, %14 : vector<3x128xf32>
    %19 = arith.mulf %11, %11 : vector<3x128xf32>
    %20 = arith.subf %18, %19 : vector<3x128xf32>
    %cst_3 = arith.constant 0.000000e+00 : f32
    %21 = vector.broadcast %cst_3 : f32 to vector<5x128xf32>
    %22 = tpu.concatenate %0, %1, %2, %5, %8, %11, %14, %17, %20, %21 in 0 : vector<3x128xf32>, vector<3x128xf32>, vector<3x128xf32>, vector<3x128xf32>, vector<3x128xf32>, vector<3x128xf32>, vector<3x128xf32>, vector<3x128xf32>, vector<3x128xf32>, vector<5x128xf32> -> vector<32x128xf32>
    %23 = tpu.transpose %22, [1, 0] : vector<32x128xf32> -> vector<128x32xf32>
    %24 = vector.extract_strided_slice %23 {offsets = [0, 0], sizes = [128, 27], strides = [1, 1]} : vector<128x32xf32> to vector<128x27xf32>
    %c0_4 = arith.constant 0 : index
    %c0_5 = arith.constant 0 : index
    %25 = vector.load %arg2[%c0_4, %c0_5] : memref<128x27xf32, #tpu.memory_space<vmem>>, vector<128x27xf32>
    tpu.vector_store %arg2[%c0_4, %c0_5], %24 {strides = array<i32>} : memref<128x27xf32, #tpu.memory_space<vmem>>, vector<128x27xf32>,
    return
  }
  func.func @transform_0(%arg0: i32) -> (i32, i32) {
    %c0_i32 = arith.constant 0 : i32
    %c0_i32_0 = arith.constant 0 : i32
    return %c0_i32, %arg0 : i32, i32
  }
  func.func @transform_1(%arg0: i32) -> (i32, i32) {
    %c0_i32 = arith.constant 0 : i32
    %c0_i32_0 = arith.constant 0 : i32
    return %arg0, %c0_i32 : i32, i32
  }
}

</mosaic_0001>

<llo_original>
// kernel: tpu_custom_call.1
$region0: #{tpu_custom_call.1}
  #allocation0 [shape = 'u32[]', space=smem, size = 0x4, offset = 0x4, fixed_abs, tag = 'smem constant byte address 0x4 - core index']
  #allocation1 [shape = 'u32[144,128]{1,0:T(1,128)}', space=vmem, size = 0x12000, scoped, tag = 'internal scratch']
  %s0 = inlined_call_operand.hbm [shape: f32[3,128], index: 0, kind: input, shape index: {}]
  %s1 = inlined_call_operand.vmem [shape: f32[128,27], index: 1, kind: output, shape index: {}]
  %s2 = sld [smem:[#allocation0]]
  $region18: #{tpu_custom_call.1} parent=0
    _
  %s4 = ssub.s32 1, %s2
  %s5 = scalar_select 0, %s4, %s2
  $region1: #{tpu_custom_call.1} parent=0
    #allocation2 [shape = 'u8[2048]{0}', space=vmem, size = 0x800, scoped, tag = 'input window, operand 0, single buffered']
    #allocation3 [shape = 's32[1]{0}', space=sflag, size = 0x4, scoped, tag = 'scoped memory for tpu_custom_call.1']
    %6 = vsyncpa [#allocation3], 0
    // Predicated region
    $region2: #{tpu_custom_call.1} parent=1 // pred_check
      _
    $region3: #{tpu_custom_call.1} parent=1 // pred_check_branch
      %8 = sbr.rel (0) target = $region5
    $region4: #{tpu_custom_call.1} parent=1 // pred_region
      %s10 = ssub.s32 64, 64
      %11 = vsyncadd [#allocation3], %s10
      %s13 = sshll.u32 [#allocation2], 4
      %s14 = int_to_ptr.vmem [resolvable:$true] %s13
      %16 = dma.hbm_to_vmem [thread:$0]  %s0, 64, %s14, [#allocation3]
    $region5: #{tpu_custom_call.1} parent=1 // pred_fallthru
      _
    // Predicated region
    $region6: #{tpu_custom_call.1} parent=1 // pred_check
      _
    $region7: #{tpu_custom_call.1} parent=1 // pred_check_branch
      %18 = sbr.rel (0) target = $region9
    $region8: #{tpu_custom_call.1} parent=1 // pred_region
      %19 = dma.done [#allocation3], 64
    $region9: #{tpu_custom_call.1} parent=1 // pred_fallthru
      _
    %v20 = vld [vmem:[#allocation2] sm:$0x7]
    %v21 = vand.u32 2147483647, %v20
    %vm22 = vcmp.le.f32.partialorder %v21, 0.7853982
    %vm23 = vcmp.lt.s32.totalorder %v20, 0
    %v24 = vand.u32 %v20, 2139095040
    %v25 = vshrl.u32 %v24, 23
    %v26 = vsub.s32 %v25, 127
    %v27 = vand.u32 2147483647, %v20
    %v28 = vand.u32 %v27, 8388607
    %v29 = vor.u32 %v28, 8388608
    %v30 = vsub.s32 0, %v29
    %v31 = vadd.s32 %v26, 1
    %vm32 = vcmp.gt.s32.totalorder %v31, 0
    %v33 = vsel %vm32, %v31, 0
    %v34 = vshrl.u32 %v33, 5
    %v35 = vand.u32 %v33, 31
    %v36 = vsub.s32 32, %v35
    %v37 = vshrl.u32 683565275, %v36
    %v38 = vshll.u32 683565275, %v35
    %v39 = vshrl.u32 2475754826, %v36
    %v40 = vor.u32 %v38, %v39
    %v41 = vshll.u32 2475754826, %v35
    %v42 = vshrl.u32 2131351028, %v36
    %v43 = vor.u32 %v41, %v42
    %v44 = vshll.u32 2131351028, %v35
    %v45 = vshrl.u32 2102212464, %v36
    %v46 = vor.u32 %v44, %v45
    %v47 = vshll.u32 2102212464, %v35
    %v48 = vshrl.u32 920167782, %v36
    %v49 = vor.u32 %v47, %v48
    %v50 = vshll.u32 920167782, %v35
    %v51 = vshrl.u32 1326507024, %v36
    %v52 = vor.u32 %v50, %v51
    %vm53 = vcmp.lt.s32.totalorder %v34, 1
    %vm54 = vcmp.lt.s32.totalorder %v34, 2
    %vm55 = vcmp.lt.s32.totalorder %v34, 3
    %vm56 = vcmp.lt.s32.totalorder %v34, 4
    %v57 = vsel %vm53, %v37, %v40
    %v58 = vsel %vm56, %v46, 2102212464
    %v59 = vsel %vm55, %v43, %v58
    %v60 = vsel %vm54, %v57, %v59
    %v61 = vsel %vm53, %v40, %v43
    %v62 = vsel %vm56, %v49, 920167782
    %v63 = vsel %vm55, %v46, %v62
    %v64 = vsel %vm54, %v61, %v63
    %v65 = vsel %vm53, %v43, %v46
    %v66 = vsel %vm56, %v52, 1326507024
    %v67 = vsel %vm55, %v49, %v66
    %v68 = vsel %vm54, %v65, %v67
    %v69 = vshll.u32 %v29, 8
    %v70 = vmul.u32.u64.compose %v69, %v68
    %v71 = vextract.low.u32 %v70
    %v72 = vextract.high.u32 %v70
    %v73 = vmul.u32.u64.compose %v69, %v64
    %v74 = vextract.low.u32 %v73
    %v75 = vextract.high.u32 %v73
    %v76 = vmul.u32 %v69, %v60
    %v77 = vadd.s32 %v72, %v74
    %vm78 = vc.u32 %v72, %v74
    %v79 = vadd.s32 %v75, 1
    %v80 = vsel %vm78, %v79, %v75
    %v81 = vadd.s32 %v76, %v80
    %v82 = vadd.s32 %v81, 536870912
    %v83 = vshrl.u32 %v82, 30
    %v84 = vshll.u32 %v83, 30
    %v85 = vsub.s32 %v81, %v84
    %vm86 = vcmp.lt.s32.totalorder %v85, 0
    %v87 = vsub.s32 0, %v85
    %v88 = vsel %vm86, %v87, %v85
    %v89 = vclz %v88
    %v90 = vsub.s32 %v89, 2
    %vm91 = vcmp.gt.s32.totalorder 0, %v90
    %v92 = vsel %vm91, 0, %v90
    %v93 = vsub.s32 32, %v92
    %v94 = vshll.u32 %v85, %v92
    %v95 = vshrl.u32 %v77, %v93
    %v96 = vor.u32 %v94, %v95
    %v97 = vsub.s32 4294967266, %v92
    %v98 = vadd.s32 %v97, 127
    %v99 = vshll.u32 %v98, 23
    %v100 = vor.u32 4788187, %v99
    %v101 = vand.u32 2147483647, %v100
    %v103 = vcvt.s32.f32 %v96
    %v104 = vmul.f32 %v103, %v101
    %v105 = vxor.u32 %v104, 2147483648
    %v106 = vsel %vm23, %v105, %v104
    %v107 = vsub.s32 4, %v83
    %v108 = vsel %vm23, %v107, %v83
    %v109 = vsel %vm22, %v20, %v106
    %v110 = vsel %vm22, 0, %v108
    %v111 = vcosq.f32.pop %v109
    %v112 = vsinq.f32.pop %v109
    %vm113 = vweird.f32 %v20
    %v114 = vadd.s32 %v110, 3
    %v115 = vand.u32 %v114, 3
    %vm116 = vcmp.lt.s32.totalorder %v115, 2
    %vm117 = vcmp.eq.s32.totalorder %v115, 0
    %v118 = vxor.u32 %v112, 2147483648
    %v119 = vsel %vm117, %v111, %v118
    %vm120 = vcmp.eq.s32.totalorder %v115, 2
    %v121 = vxor.u32 %v111, 2147483648
    %v122 = vsel %vm120, %v121, %v112
    %v123 = vsel %vm116, %v119, %v122
    %v124 = vsel %vm113, nan, %v123
    %v125 = vand.u32 2147483647, %v20
    %vm126 = vcmp.le.f32.partialorder %v125, 0.7853982
    %vm127 = vcmp.lt.s32.totalorder %v20, 0
    %v128 = vand.u32 %v20, 2139095040
    %v129 = vshrl.u32 %v128, 23
    %v130 = vsub.s32 %v129, 127
    %v131 = vand.u32 2147483647, %v20
    %v132 = vand.u32 %v131, 8388607
    %v133 = vor.u32 %v132, 8388608
    %v134 = vsub.s32 0, %v133
    %v135 = vadd.s32 %v130, 1
    %vm136 = vcmp.gt.s32.totalorder %v135, 0
    %v137 = vsel %vm136, %v135, 0
    %v138 = vshrl.u32 %v137, 5
    %v139 = vand.u32 %v137, 31
    %v140 = vsub.s32 32, %v139
    %v141 = vshrl.u32 683565275, %v140
    %v142 = vshll.u32 683565275, %v139
    %v143 = vshrl.u32 2475754826, %v140
    %v144 = vor.u32 %v142, %v143
    %v145 = vshll.u32 2475754826, %v139
    %v146 = vshrl.u32 2131351028, %v140
    %v147 = vor.u32 %v145, %v146
    %v148 = vshll.u32 2131351028, %v139
    %v149 = vshrl.u32 2102212464, %v140
    %v150 = vor.u32 %v148, %v149
    %v151 = vshll.u32 2102212464, %v139
    %v152 = vshrl.u32 920167782, %v140
    %v153 = vor.u32 %v151, %v152
    %v154 = vshll.u32 920167782, %v139
    %v155 = vshrl.u32 1326507024, %v140
    %v156 = vor.u32 %v154, %v155
    %vm157 = vcmp.lt.s32.totalorder %v138, 1
    %vm158 = vcmp.lt.s32.totalorder %v138, 2
    %vm159 = vcmp.lt.s32.totalorder %v138, 3
    %vm160 = vcmp.lt.s32.totalorder %v138, 4
    %v161 = vsel %vm157, %v141, %v144
    %v162 = vsel %vm160, %v150, 2102212464
    %v163 = vsel %vm159, %v147, %v162
    %v164 = vsel %vm158, %v161, %v163
    %v165 = vsel %vm157, %v144, %v147
    %v166 = vsel %vm160, %v153, 920167782
    %v167 = vsel %vm159, %v150, %v166
    %v168 = vsel %vm158, %v165, %v167
    %v169 = vsel %vm157, %v147, %v150
    %v170 = vsel %vm160, %v156, 1326507024
    %v171 = vsel %vm159, %v153, %v170
    %v172 = vsel %vm158, %v169, %v171
    %v173 = vshll.u32 %v133, 8
    %v174 = vmul.u32.u64.compose %v173, %v172
    %v175 = vextract.low.u32 %v174
    %v176 = vextract.high.u32 %v174
    %v177 = vmul.u32.u64.compose %v173, %v168
    %v178 = vextract.low.u32 %v177
    %v179 = vextract.high.u32 %v177
    %v180 = vmul.u32 %v173, %v164
    %v181 = vadd.s32 %v176, %v178
    %vm182 = vc.u32 %v176, %v178
    %v183 = vadd.s32 %v179, 1
    %v184 = vsel %vm182, %v183, %v179
    %v185 = vadd.s32 %v180, %v184
    %v186 = vadd.s32 %v185, 536870912
    %v187 = vshrl.u32 %v186, 30
    %v188 = vshll.u32 %v187, 30
    %v189 = vsub.s32 %v185, %v188
    %vm190 = vcmp.lt.s32.totalorder %v189, 0
    %v191 = vsub.s32 0, %v189
    %v192 = vsel %vm190, %v191, %v189
    %v193 = vclz %v192
    %v194 = vsub.s32 %v193, 2
    %vm195 = vcmp.gt.s32.totalorder 0, %v194
    %v196 = vsel %vm195, 0, %v194
    %v197 = vsub.s32 32, %v196
    %v198 = vshll.u32 %v189, %v196
    %v199 = vshrl.u32 %v181, %v197
    %v200 = vor.u32 %v198, %v199
    %v201 = vsub.s32 4294967266, %v196
    %v202 = vadd.s32 %v201, 127
    %v203 = vshll.u32 %v202, 23
    %v204 = vor.u32 4788187, %v203
    %v205 = vand.u32 2147483647, %v204
    %v207 = vcvt.s32.f32 %v200
    %v208 = vmul.f32 %v207, %v205
    %v209 = vxor.u32 %v208, 2147483648
    %v210 = vsel %vm127, %v209, %v208
    %v211 = vsub.s32 4, %v187
    %v212 = vsel %vm127, %v211, %v187
    %v213 = vsel %vm126, %v20, %v210
    %v214 = vsel %vm126, 0, %v212
    %v215 = vcosq.f32.pop %v213
    %v216 = vsinq.f32.pop %v213
    %vm217 = vweird.f32 %v20
    %v218 = vand.u32 %v214, 3
    %vm219 = vcmp.lt.s32.totalorder %v218, 2
    %vm220 = vcmp.eq.s32.totalorder %v218, 0
    %v221 = vxor.u32 %v216, 2147483648
    %v222 = vsel %vm220, %v215, %v221
    %vm223 = vcmp.eq.s32.totalorder %v218, 2
    %v224 = vxor.u32 %v215, 2147483648
    %v225 = vsel %vm223, %v224, %v216
    %v226 = vsel %vm219, %v222, %v225
    %v227 = vsel %vm217, nan, %v226
    %v228 = vmul.f32 %v124, 2.0
    %v229 = vmul.f32 %v228, %v227
    %v230 = vmul.f32 %v227, %v227
    %v231 = vmul.f32 %v124, %v124
    %v232 = vsub.f32 %v230, %v231
    %v233 = vmul.f32 %v229, 2.0
    %v234 = vmul.f32 %v233, %v232
    %v235 = vmul.f32 %v232, %v232
    %v236 = vmul.f32 %v229, %v229
    %v237 = vsub.f32 %v235, %v236
    %v238 = vmul.f32 %v234, 2.0
    %v239 = vmul.f32 %v238, %v237
    %v240 = vmul.f32 %v237, %v237
    %v241 = vmul.f32 %v234, %v234
    %v242 = vsub.f32 %v240, %v241
    %v244 = vrot.slane %v124, 5
    %v247 = vrot.slane %v227, 2
    %v250 = vrot.slane %v229, 7
    %v253 = vrot.slane %v232, 4
    %v256 = vrot.slane %v234, 1
    %v259 = vrot.slane %v237, 6
    %v262 = vrot.slane %v239, 3
    %vm264 = vcmask 1042432
    %v265 = vsel %vm264, %v20, %v244
    %vm266 = vcmask 1045504
    %v267 = vsel %vm266, %v265, %v247
    %vm268 = vcmask 1040384
    %v269 = vsel %vm268, %v247, %v250
    %vm270 = vcmask 1043456
    %v271 = vsel %vm270, %v269, %v253
    %vm272 = vcmask 1046528
    %v273 = vsel %vm272, %v271, %v256
    %vm274 = vcmask 1041408
    %v275 = vsel %vm274, %v256, %v259
    %vm276 = vcmask 1044480
    %v277 = vsel %vm276, %v275, %v262
    %v278 = vsel %vm264, %v242, 0.0
    %279 = vxpose.xlu0.b32.start [1/16] %v267, 128
    %280 = vxpose.xlu0.b32.cont [2/16] %v273, 128
    %281 = vxpose.xlu0.b32.cont [3/16] %v277, 128
    %282 = vxpose.xlu0.b32.cont [4/16] %v278, 128
    %283 = vxpose.xlu0.b32.cont [5/16] 0.0, 128
    %284 = vxpose.xlu0.b32.cont [6/16] 0.0, 128
    %285 = vxpose.xlu0.b32.cont [7/16] 0.0, 128
    %286 = vxpose.xlu0.b32.cont [8/16] 0.0, 128
    %287 = vxpose.xlu0.b32.cont [9/16] 0.0, 128
    %288 = vxpose.xlu0.b32.cont [10/16] 0.0, 128
    %289 = vxpose.xlu0.b32.cont [11/16] 0.0, 128
    %290 = vxpose.xlu0.b32.cont [12/16] 0.0, 128
    %291 = vxpose.xlu0.b32.cont [13/16] 0.0, 128
    %292 = vxpose.xlu0.b32.cont [14/16] 0.0, 128
    %293 = vxpose.xlu0.b32.cont [15/16] 0.0, 128
    %294 = vxpose.xlu0.b32.end [16/16] 0.0, 128
    %v295 = vpop.trf.xlu0
    %v296 = vpop.trf.xlu0
    %v297 = vpop.trf.xlu0
    %v298 = vpop.trf.xlu0
    %v299 = vpop.trf.xlu0
    %v300 = vpop.trf.xlu0
    %v301 = vpop.trf.xlu0
    %v302 = vpop.trf.xlu0
    %v303 = vpop.trf.xlu0
    %v304 = vpop.trf.xlu0
    %v305 = vpop.trf.xlu0
    %v306 = vpop.trf.xlu0
    %v307 = vpop.trf.xlu0
    %v308 = vpop.trf.xlu0
    %v309 = vpop.trf.xlu0
    %v310 = vpop.trf.xlu0
    %vm311 = vcmask 220160
    %312 = vst.msk [vmem:[%s1] sm:$0xff] %vm311, %v295
    %313 = vst.msk [vmem:[%s1 + $0x8] sm:$0xff] %vm311, %v296
    %314 = vst.msk [vmem:[%s1 + $0x10] sm:$0xff] %vm311, %v297
    %315 = vst.msk [vmem:[%s1 + $0x18] sm:$0xff] %vm311, %v298
    %316 = vst.msk [vmem:[%s1 + $0x20] sm:$0xff] %vm311, %v299
    %317 = vst.msk [vmem:[%s1 + $0x28] sm:$0xff] %vm311, %v300
    %318 = vst.msk [vmem:[%s1 + $0x30] sm:$0xff] %vm311, %v301
    %319 = vst.msk [vmem:[%s1 + $0x38] sm:$0xff] %vm311, %v302
    %320 = vst.msk [vmem:[%s1 + $0x40] sm:$0xff] %vm311, %v303
    %321 = vst.msk [vmem:[%s1 + $0x48] sm:$0xff] %vm311, %v304
    %322 = vst.msk [vmem:[%s1 + $0x50] sm:$0xff] %vm311, %v305
    %323 = vst.msk [vmem:[%s1 + $0x58] sm:$0xff] %vm311, %v306
    %324 = vst.msk [vmem:[%s1 + $0x60] sm:$0xff] %vm311, %v307
    %325 = vst.msk [vmem:[%s1 + $0x68] sm:$0xff] %vm311, %v308
    %326 = vst.msk [vmem:[%s1 + $0x70] sm:$0xff] %vm311, %v309
    %327 = vst.msk [vmem:[%s1 + $0x78] sm:$0xff] %vm311, %v310
    // Predicated region
    $region10: #{tpu_custom_call.1} parent=1 // pred_check
      _
    $region11: #{tpu_custom_call.1} parent=1 // pred_check_branch
      %329 = sbr.rel (0) target = $region13
    $region12: #{tpu_custom_call.1} parent=1 // pred_region
      _
    $region13: #{tpu_custom_call.1} parent=1 // pred_fallthru
      _
    // Predicated region
    $region14: #{tpu_custom_call.1} parent=1 // pred_check
      _
    $region15: #{tpu_custom_call.1} parent=1 // pred_check_branch
      %331 = sbr.rel (0) target = $region17
    $region16: #{tpu_custom_call.1} parent=1 // pred_region
      _
    $region17: #{tpu_custom_call.1} parent=1 // pred_fallthru
      _
    %332 = vsyncpa [#allocation3], 1

</llo_original>
